<compile_context>
chip_gen: v7x
topology: tpu7x:2x2x1
jax: 0.10.0
libtpu: 0.0.40
codegen_flags: <defaults>
</compile_context>

<pallas_src>
import jax
import jax.numpy as jnp
from jax.experimental import pallas as pl
from jax.experimental.pallas import tpu as pltpu

LOG_STD_MAX = 2.0
LOG_STD_MIN = -5.0


def _round_up(x, m):
    return ((x + m - 1) // m) * m


def _gaussian_policy_kernel(obs_ref, w1_ref, b1_ref, wm_ref, bm_ref, ws_ref, bs_ref,
                            mean_ref, std_ref):
    # obs / weights are bf16 (MXU inputs); accumulation + elementwise math in f32.
    x = obs_ref[...]                                                        # [TB, OBS_P] bf16

    h = jnp.dot(x, w1_ref[...], preferred_element_type=jnp.float32) + b1_ref[...]
    h = jnp.maximum(h, 0.0)                                                 # [TB, HID_P] f32
    hb = h.astype(jnp.bfloat16)                                             # MXU input only

    mean = jnp.dot(hb, wm_ref[...], preferred_element_type=jnp.float32) + bm_ref[...]

    log_std = jnp.tanh(
        jnp.dot(hb, ws_ref[...], preferred_element_type=jnp.float32) + bs_ref[...])
    log_std = LOG_STD_MIN + 0.5 * (LOG_STD_MAX - LOG_STD_MIN) * (log_std + 1.0)
    std = jnp.exp(log_std)                                                  # EUP

    mean_ref[...] = mean.astype(mean_ref.dtype)
    std_ref[...] = std.astype(std_ref.dtype)


def gaussian_policy_forward(obs, params, *, block_b=512):
    """obs: [B, obs_dim] f32; params: w1,b1 (net), wm,bm (mean head), ws,bs (std head).

    Returns (mean, std) of the Normal distribution, each [B, act_dim] f32."""
    w1, b1, wm, bm, ws, bs = (params[k] for k in ("w1", "b1", "wm", "bm", "ws", "bs"))
    B, obs_dim = obs.shape
    hidden = w1.shape[1]
    act_dim = wm.shape[1]

    # Lane-dense padding of feature dims; batch padded to a multiple of the tile.
    obs_p = _round_up(obs_dim, 128)
    hid_p = _round_up(hidden, 128)
    act_p = _round_up(act_dim, 128)
    tb = block_b if B >= block_b else _round_up(B, 8)
    b_pad = _round_up(B, tb)

    def pad2(a, r, c):
        return jnp.pad(a, ((0, r - a.shape[0]), (0, c - a.shape[1])))

    f32, bf16 = jnp.float32, jnp.bfloat16
    obs_pd = pad2(obs, b_pad, obs_p).astype(bf16)
    w1p = pad2(w1, obs_p, hid_p).astype(bf16)
    b1p = pad2(b1, 1, hid_p).astype(f32)
    wmp = pad2(wm, hid_p, act_p).astype(bf16)
    bmp = pad2(bm, 1, act_p).astype(f32)
    wsp = pad2(ws, hid_p, act_p).astype(bf16)
    bsp = pad2(bs, 1, act_p).astype(f32)

    grid = (pl.cdiv(b_pad, tb),)

    # Weights/biases: constant block index -> DMA'd once, stay resident in VMEM.
    def resident(shape):
        return pl.BlockSpec(shape, lambda i: (0, 0))

    flops = 2 * b_pad * (obs_p * hid_p + 2 * hid_p * act_p)
    bytes_accessed = (obs_pd.size * 2 + w1p.size * 2 + wmp.size * 2 + wsp.size * 2
                      + (b1p.size + bmp.size + bsp.size) * 4
                      + 2 * b_pad * act_p * 4)

    mean_p, std_p = pl.pallas_call(
        _gaussian_policy_kernel,
        out_shape=(jax.ShapeDtypeStruct((b_pad, act_p), f32),
                   jax.ShapeDtypeStruct((b_pad, act_p), f32)),
        grid=grid,
        in_specs=[
            pl.BlockSpec((tb, obs_p), lambda i: (i, 0)),   # streamed per batch tile
            resident(w1p.shape), resident(b1p.shape),
            resident(wmp.shape), resident(bmp.shape),
            resident(wsp.shape), resident(bsp.shape),
        ],
        out_specs=(pl.BlockSpec((tb, act_p), lambda i: (i, 0)),
                   pl.BlockSpec((tb, act_p), lambda i: (i, 0))),
        compiler_params=pltpu.CompilerParams(
            dimension_semantics=("parallel",),             # megacore shards the batch axis
        ),
        cost_estimate=pl.CostEstimate(
            flops=flops,
            transcendentals=2 * b_pad * act_p,             # tanh + exp
            bytes_accessed=bytes_accessed,
        ),
    )(obs_pd, w1p, b1p, wmp, bmp, wsp, bsp)

    return mean_p[:B, :act_dim], std_p[:B, :act_dim]


def gaussian_policy_act(obs, params, key=None, deterministic=True):
    """Equivalent of GaussianPolicy.act: dist.mean or a reparameterized sample."""
    mean, std = gaussian_policy_forward(obs, params)
    if deterministic or key is None:
        return mean
    return mean + std * jax.random.normal(key, mean.shape, mean.dtype)


def init_params(key, obs_dim, act_dim, hidden_dim=256, n_hidden=2):
    """PyTorch-default uniform init. Weights stored [in, out]; biases [1, out]."""
    assert n_hidden == 2, "this script instantiates the default n_hidden=2 topology"

    def linear(k, fan_in, fan_out):
        bound = 1.0 / jnp.sqrt(fan_in)
        kw, kb = jax.random.split(k)
        w = jax.random.uniform(kw, (fan_in, fan_out), jnp.float32, -bound, bound)
        b = jax.random.uniform(kb, (1, fan_out), jnp.float32, -bound, bound)
        return w, b

    k1, k2, k3 = jax.random.split(key, 3)
    w1, b1 = linear(k1, obs_dim, hidden_dim)      # net (single Linear for n_hidden=2)
    wm, bm = linear(k2, hidden_dim, act_dim)      # mean_head
    ws, bs = linear(k3, hidden_dim, act_dim)      # std_head
    return {"w1": w1, "b1": b1, "wm": wm, "bm": bm, "ws": ws, "bs": bs}


def reference_forward(obs, params):
    """Plain-JAX reference with the same bf16 MXU-input rounding points as the kernel."""
    bf = lambda a: a.astype(jnp.bfloat16)
    h = jnp.dot(bf(obs), bf(params["w1"]), preferred_element_type=jnp.float32) + params["b1"]
    h = jnp.maximum(h, 0.0)
    hb = bf(h)
    mean = jnp.dot(hb, bf(params["wm"]), preferred_element_type=jnp.float32) + params["bm"]
    log_std = jnp.tanh(
        jnp.dot(hb, bf(params["ws"]), preferred_element_type=jnp.float32) + params["bs"])
    log_std = LOG_STD_MIN + 0.5 * (LOG_STD_MAX - LOG_STD_MIN) * (log_std + 1.0)
    return mean, jnp.exp(log_std)


if __name__ == "__main__":
    key = jax.random.PRNGKey(0)
    k_obs, k_par = jax.random.split(key)

    B, obs_dim, act_dim, hidden_dim = 8, 16, 8, 32
    obs = jax.random.normal(k_obs, (B, obs_dim), jnp.float32)
    params = init_params(k_par, obs_dim, act_dim, hidden_dim=hidden_dim, n_hidden=2)

    mean, std = gaussian_policy_forward(obs, params)
    mean, std = jax.block_until_ready((mean, std))

    mean_ref, std_ref = reference_forward(obs, params)
    assert mean.shape == (B, act_dim) and std.shape == (B, act_dim)
    assert jnp.allclose(mean, mean_ref, atol=1e-3, rtol=1e-3), "mean mismatch vs JAX reference"
    assert jnp.allclose(std, std_ref, atol=1e-3, rtol=1e-3), "std mismatch vs JAX reference"
    assert bool(jnp.all(std > 0.0)), "std must be positive"

    # deterministic action path (dist.mean)
    act = jax.block_until_ready(gaussian_policy_act(obs, params, deterministic=True))
    assert jnp.allclose(act, mean)

    print("KERNEL_OK")
</pallas_src>

<mosaic_0001>
module attributes {stable_mosaic.version = 11 : i64} {
  func.func @_gaussian_policy_kernel(%arg0: i32, %arg1: memref<8x128xbf16, #tpu.memory_space<vmem>>, %arg2: memref<128x128xbf16, #tpu.memory_space<vmem>>, %arg3: memref<1x128xf32, #tpu.memory_space<vmem>>, %arg4: memref<128x128xbf16, #tpu.memory_space<vmem>>, %arg5: memref<1x128xf32, #tpu.memory_space<vmem>>, %arg6: memref<128x128xbf16, #tpu.memory_space<vmem>>, %arg7: memref<1x128xf32, #tpu.memory_space<vmem>>, %arg8: memref<8x128xf32, #tpu.memory_space<vmem>>, %arg9: memref<8x128xf32, #tpu.memory_space<vmem>>) attributes {dimension_semantics = [#tpu.dimension_semantics<parallel>], iteration_bounds = array<i64: 1>, scalar_prefetch = 0 : i64, scratch_operands = 0 : i64, tpu.core_type = #tpu.core_type<tc>, window_params = [{transform_indices = @transform_0, window_bounds = array<i64: 8, 128>}, {pipeline_mode = #tpu.pipeline_mode<synchronous>, transform_indices = @transform_1, window_bounds = array<i64: 128, 128>}, {pipeline_mode = #tpu.pipeline_mode<synchronous>, transform_indices = @transform_2, window_bounds = array<i64: 1, 128>}, {pipeline_mode = #tpu.pipeline_mode<synchronous>, transform_indices = @transform_3, window_bounds = array<i64: 128, 128>}, {pipeline_mode = #tpu.pipeline_mode<synchronous>, transform_indices = @transform_4, window_bounds = array<i64: 1, 128>}, {pipeline_mode = #tpu.pipeline_mode<synchronous>, transform_indices = @transform_5, window_bounds = array<i64: 128, 128>}, {pipeline_mode = #tpu.pipeline_mode<synchronous>, transform_indices = @transform_6, window_bounds = array<i64: 1, 128>}, {transform_indices = @transform_7, window_bounds = array<i64: 8, 128>}, {transform_indices = @transform_8, window_bounds = array<i64: 8, 128>}]} {
    %c0 = arith.constant 0 : index
    %c0_0 = arith.constant 0 : index
    %0 = vector.load %arg1[%c0, %c0_0] : memref<8x128xbf16, #tpu.memory_space<vmem>>, vector<8x128xbf16>
    %c0_1 = arith.constant 0 : index
    %c0_2 = arith.constant 0 : index
    %1 = vector.load %arg2[%c0_1, %c0_2] : memref<128x128xbf16, #tpu.memory_space<vmem>>, vector<128x128xbf16>
    %cst = arith.constant dense<0.000000e+00> : vector<8x128xf32>
    %2 = tpu.matmul %0, %1, %cst {dimension_numbers = #tpu.dot_dimension_numbers<[1], [0], [0], [1], [0, 0, 1, 1], [], []>} : vector<8x128xbf16>, vector<128x128xbf16>, vector<8x128xf32> -> vector<8x128xf32>
    %c0_3 = arith.constant 0 : index
    %c0_4 = arith.constant 0 : index
    %3 = vector.load %arg3[%c0_3, %c0_4] : memref<1x128xf32, #tpu.memory_space<vmem>>, vector<1x128xf32>
    %4 = vector.broadcast %3 : vector<1x128xf32> to vector<8x128xf32>
    %5 = arith.addf %2, %4 : vector<8x128xf32>
    %cst_5 = arith.constant 0.000000e+00 : f32
    %6 = vector.broadcast %cst_5 : f32 to vector<8x128xf32>
    %7 = arith.maximumf %5, %6 : vector<8x128xf32>
    %8 = arith.truncf %7 : vector<8x128xf32> to vector<8x128xbf16>
    %c0_6 = arith.constant 0 : index
    %c0_7 = arith.constant 0 : index
    %9 = vector.load %arg4[%c0_6, %c0_7] : memref<128x128xbf16, #tpu.memory_space<vmem>>, vector<128x128xbf16>
    %cst_8 = arith.constant dense<0.000000e+00> : vector<8x128xf32>
    %10 = tpu.matmul %8, %9, %cst_8 {dimension_numbers = #tpu.dot_dimension_numbers<[1], [0], [0], [1], [0, 0, 1, 1], [], []>} : vector<8x128xbf16>, vector<128x128xbf16>, vector<8x128xf32> -> vector<8x128xf32>
    %c0_9 = arith.constant 0 : index
    %c0_10 = arith.constant 0 : index
    %11 = vector.load %arg5[%c0_9, %c0_10] : memref<1x128xf32, #tpu.memory_space<vmem>>, vector<1x128xf32>
    %12 = vector.broadcast %11 : vector<1x128xf32> to vector<8x128xf32>
    %13 = arith.addf %10, %12 : vector<8x128xf32>
    %c0_11 = arith.constant 0 : index
    %c0_12 = arith.constant 0 : index
    %14 = vector.load %arg6[%c0_11, %c0_12] : memref<128x128xbf16, #tpu.memory_space<vmem>>, vector<128x128xbf16>
    %cst_13 = arith.constant dense<0.000000e+00> : vector<8x128xf32>
    %15 = tpu.matmul %8, %14, %cst_13 {dimension_numbers = #tpu.dot_dimension_numbers<[1], [0], [0], [1], [0, 0, 1, 1], [], []>} : vector<8x128xbf16>, vector<128x128xbf16>, vector<8x128xf32> -> vector<8x128xf32>
    %c0_14 = arith.constant 0 : index
    %c0_15 = arith.constant 0 : index
    %16 = vector.load %arg7[%c0_14, %c0_15] : memref<1x128xf32, #tpu.memory_space<vmem>>, vector<1x128xf32>
    %17 = vector.broadcast %16 : vector<1x128xf32> to vector<8x128xf32>
    %18 = arith.addf %15, %17 : vector<8x128xf32>
    %19 = math.tanh %18 : vector<8x128xf32>
    %cst_16 = arith.constant 1.000000e+00 : f32
    %20 = vector.broadcast %cst_16 : f32 to vector<8x128xf32>
    %21 = arith.addf %19, %20 : vector<8x128xf32>
    %cst_17 = arith.constant 3.500000e+00 : f32
    %22 = vector.broadcast %cst_17 : f32 to vector<8x128xf32>
    %23 = arith.mulf %22, %21 : vector<8x128xf32>
    %cst_18 = arith.constant -5.000000e+00 : f32
    %24 = vector.broadcast %cst_18 : f32 to vector<8x128xf32>
    %25 = arith.addf %24, %23 : vector<8x128xf32>
    %26 = math.exp %25 : vector<8x128xf32>
    %c0_19 = arith.constant 0 : index
    %c0_20 = arith.constant 0 : index
    %27 = vector.load %arg8[%c0_19, %c0_20] : memref<8x128xf32, #tpu.memory_space<vmem>>, vector<8x128xf32>
    tpu.vector_store %arg8[%c0_19, %c0_20], %13 {strides = array<i32>} : memref<8x128xf32, #tpu.memory_space<vmem>>, vector<8x128xf32>,
    %c0_21 = arith.constant 0 : index
    %c0_22 = arith.constant 0 : index
    %28 = vector.load %arg9[%c0_21, %c0_22] : memref<8x128xf32, #tpu.memory_space<vmem>>, vector<8x128xf32>
    tpu.vector_store %arg9[%c0_21, %c0_22], %26 {strides = array<i32>} : memref<8x128xf32, #tpu.memory_space<vmem>>, vector<8x128xf32>,
    return
  }
  func.func @transform_0(%arg0: i32) -> (i32, i32) {
    %c0_i32 = arith.constant 0 : i32
    %c0_i32_0 = arith.constant 0 : i32
    return %arg0, %c0_i32 : i32, i32
  }
  func.func @transform_1(%arg0: i32) -> (i32, i32) {
    %c0_i32 = arith.constant 0 : i32
    %c0_i32_0 = arith.constant 0 : i32
    %c0_i32_1 = arith.constant 0 : i32
    return %c0_i32, %c0_i32_0 : i32, i32
  }
  func.func @transform_2(%arg0: i32) -> (i32, i32) {
    %c0_i32 = arith.constant 0 : i32
    %c0_i32_0 = arith.constant 0 : i32
    %c0_i32_1 = arith.constant 0 : i32
    return %c0_i32, %c0_i32_0 : i32, i32
  }
  func.func @transform_3(%arg0: i32) -> (i32, i32) {
    %c0_i32 = arith.constant 0 : i32
    %c0_i32_0 = arith.constant 0 : i32
    %c0_i32_1 = arith.constant 0 : i32
    return %c0_i32, %c0_i32_0 : i32, i32
  }
  func.func @transform_4(%arg0: i32) -> (i32, i32) {
    %c0_i32 = arith.constant 0 : i32
    %c0_i32_0 = arith.constant 0 : i32
    %c0_i32_1 = arith.constant 0 : i32
    return %c0_i32, %c0_i32_0 : i32, i32
  }
  func.func @transform_5(%arg0: i32) -> (i32, i32) {
    %c0_i32 = arith.constant 0 : i32
    %c0_i32_0 = arith.constant 0 : i32
    %c0_i32_1 = arith.constant 0 : i32
    return %c0_i32, %c0_i32_0 : i32, i32
  }
  func.func @transform_6(%arg0: i32) -> (i32, i32) {
    %c0_i32 = arith.constant 0 : i32
    %c0_i32_0 = arith.constant 0 : i32
    %c0_i32_1 = arith.constant 0 : i32
    return %c0_i32, %c0_i32_0 : i32, i32
  }
  func.func @transform_7(%arg0: i32) -> (i32, i32) {
    %c0_i32 = arith.constant 0 : i32
    %c0_i32_0 = arith.constant 0 : i32
    return %arg0, %c0_i32 : i32, i32
  }
  func.func @transform_8(%arg0: i32) -> (i32, i32) {
    %c0_i32 = arith.constant 0 : i32
    %c0_i32_0 = arith.constant 0 : i32
    return %arg0, %c0_i32 : i32, i32
  }
}

</mosaic_0001>

<llo_original>
// kernel: tpu_custom_call.1
$region0: #{tpu_custom_call.1}
  #allocation0 [shape = 'u32[]', space=smem, size = 0x4, offset = 0x4, fixed_abs, tag = 'smem constant byte address 0x4 - core index']
  #allocation1 [shape = 'u32[144,128]{1,0:T(1,128)}', space=vmem, size = 0x12000, scoped, tag = 'internal scratch']
  %s0 = inlined_call_operand.hbm [shape: bf16[8,128], index: 0, kind: input, shape index: {}]
  %s1 = inlined_call_operand.hbm [shape: bf16[128,128], index: 1, kind: input, shape index: {}]
  %s2 = inlined_call_operand.vmem [shape: f32[1,128], index: 2, kind: input, shape index: {}]
  %s3 = inlined_call_operand.hbm [shape: bf16[128,128], index: 3, kind: input, shape index: {}]
  %s4 = inlined_call_operand.vmem [shape: f32[1,128], index: 4, kind: input, shape index: {}]
  %s5 = inlined_call_operand.hbm [shape: bf16[128,128], index: 5, kind: input, shape index: {}]
  %s6 = inlined_call_operand.vmem [shape: f32[1,128], index: 6, kind: input, shape index: {}]
  %s7 = inlined_call_operand.hbm [shape: f32[8,128], index: 7, kind: output, shape index: {0}]
  %s8 = inlined_call_operand.hbm [shape: f32[8,128], index: 8, kind: output, shape index: {1}]
  %9 = xla_tuple %s7, %s8
  %s10 = sld [smem:[#allocation0]]
  $region62: #{tpu_custom_call.1} parent=0
    _
  %s12 = ssub.s32 1, %s10
  %s13 = scalar_select 0, %s12, %s10
  $region1: #{tpu_custom_call.1} parent=0
    #allocation2 [shape = 'u8[2048]{0}', space=vmem, size = 0x800, scoped, tag = 'input window, operand 0, single buffered']
    #allocation3 [shape = 's32[1]{0}', space=sflag, size = 0x4, scoped, tag = 'scoped memory for tpu_custom_call.1']
    #allocation4 [shape = 's32[1]{0}', space=sflag, size = 0x4, scoped, tag = 'scoped memory for tpu_custom_call.1']
    #allocation5 [shape = 'u8[32768]{0}', space=vmem, size = 0x8000, scoped, tag = 'input window, operand 1, single buffered']
    #allocation6 [shape = 's32[1]{0}', space=sflag, size = 0x4, scoped, tag = 'scoped memory for tpu_custom_call.1']
    #allocation7 [shape = 'u8[32768]{0}', space=vmem, size = 0x8000, scoped, tag = 'input window, operand 3, single buffered']
    #allocation8 [shape = 'u8[32768]{0}', space=vmem, size = 0x8000, scoped, tag = 'input window, operand 5, single buffered']
    #allocation9 [shape = 's32[1]{0}', space=sflag, size = 0x4, scoped, tag = 'scoped memory for tpu_custom_call.1']
    #allocation10 [shape = 'u8[4096]{0}', space=vmem, size = 0x1000, scoped, tag = 'output window, operand 0, single buffered']
    #allocation11 [shape = 'u8[4096]{0}', space=vmem, size = 0x1000, scoped, tag = 'output window, operand 1, single buffered']
    #allocation12 [shape = 's32[1]{0}', space=sflag, size = 0x4, scoped, tag = 'scoped memory for tpu_custom_call.1']
    %14 = vsyncpa [#allocation3], 0
    %15 = vsyncpa [#allocation6], 0
    %16 = vsyncpa [#allocation9], 0
    %17 = vsyncpa [#allocation4], 0
    %18 = vsyncpa [#allocation12], 0
    // Predicated region
    $region2: #{tpu_custom_call.1} parent=1 // pred_check
      _
    $region3: #{tpu_custom_call.1} parent=1 // pred_check_branch
      %20 = sbr.rel (0) target = $region5
    $region4: #{tpu_custom_call.1} parent=1 // pred_region
      %s22 = ssub.s32 64, 64
      %23 = vsyncadd [#allocation3], %s22
      %s25 = sshll.u32 [#allocation2], 4
      %s26 = int_to_ptr.vmem [resolvable:$true] %s25
      %28 = dma.hbm_to_vmem [thread:$0]  %s0, 64, %s26, [#allocation3]
    $region5: #{tpu_custom_call.1} parent=1 // pred_fallthru
      _
    // Predicated region
    $region6: #{tpu_custom_call.1} parent=1 // pred_check
      _
    $region7: #{tpu_custom_call.1} parent=1 // pred_check_branch
      %30 = sbr.rel (0) target = $region9
    $region8: #{tpu_custom_call.1} parent=1 // pred_region
      %s32 = ssub.s32 1024, 1024
      %33 = vsyncadd [#allocation6], %s32
      %s34 = sshll.u32 [#allocation5], 4
      %s35 = int_to_ptr.vmem [resolvable:$true] %s34
      %40 = dma.hbm_to_vmem [thread:$0]  %s1, 1024, %s35, [#allocation6], 64, 64, 4
    $region9: #{tpu_custom_call.1} parent=1 // pred_fallthru
      _
    // Predicated region
    $region10: #{tpu_custom_call.1} parent=1 // pred_check
      _
    $region11: #{tpu_custom_call.1} parent=1 // pred_check_branch
      %42 = sbr.rel (0) target = $region13
    $region12: #{tpu_custom_call.1} parent=1 // pred_region
      _
    $region13: #{tpu_custom_call.1} parent=1 // pred_fallthru
      _
    // Predicated region
    $region14: #{tpu_custom_call.1} parent=1 // pred_check
      _
    $region15: #{tpu_custom_call.1} parent=1 // pred_check_branch
      %44 = sbr.rel (0) target = $region17
    $region16: #{tpu_custom_call.1} parent=1 // pred_region
      %s46 = ssub.s32 1024, 1024
      %47 = vsyncadd [#allocation6], %s46
      %s48 = sshll.u32 [#allocation7], 4
      %s49 = int_to_ptr.vmem [resolvable:$true] %s48
      %54 = dma.hbm_to_vmem [thread:$0]  %s3, 1024, %s49, [#allocation6], 64, 64, 4
    $region17: #{tpu_custom_call.1} parent=1 // pred_fallthru
      _
    // Predicated region
    $region18: #{tpu_custom_call.1} parent=1 // pred_check
      _
    $region19: #{tpu_custom_call.1} parent=1 // pred_check_branch
      %56 = sbr.rel (0) target = $region21
    $region20: #{tpu_custom_call.1} parent=1 // pred_region
      _
    $region21: #{tpu_custom_call.1} parent=1 // pred_fallthru
      _
    // Predicated region
    $region22: #{tpu_custom_call.1} parent=1 // pred_check
      _
    $region23: #{tpu_custom_call.1} parent=1 // pred_check_branch
      %58 = sbr.rel (0) target = $region25
    $region24: #{tpu_custom_call.1} parent=1 // pred_region
      %s60 = ssub.s32 1024, 1024
      %61 = vsyncadd [#allocation9], %s60
      %s62 = sshll.u32 [#allocation8], 4
      %s63 = int_to_ptr.vmem [resolvable:$true] %s62
      %68 = dma.hbm_to_vmem [thread:$0]  %s5, 1024, %s63, [#allocation9], 64, 64, 4
    $region25: #{tpu_custom_call.1} parent=1 // pred_fallthru
      _
    // Predicated region
    $region26: #{tpu_custom_call.1} parent=1 // pred_check
      _
    $region27: #{tpu_custom_call.1} parent=1 // pred_check_branch
      %70 = sbr.rel (0) target = $region29
    $region28: #{tpu_custom_call.1} parent=1 // pred_region
      _
    $region29: #{tpu_custom_call.1} parent=1 // pred_fallthru
      _
    // Predicated region
    $region30: #{tpu_custom_call.1} parent=1 // pred_check
      _
    $region31: #{tpu_custom_call.1} parent=1 // pred_check_branch
      %72 = sbr.rel (0) target = $region33
    $region32: #{tpu_custom_call.1} parent=1 // pred_region
      %73 = dma.done [#allocation3], 64
    $region33: #{tpu_custom_call.1} parent=1 // pred_fallthru
      _
    // Predicated region
    $region34: #{tpu_custom_call.1} parent=1 // pred_check
      _
    $region35: #{tpu_custom_call.1} parent=1 // pred_check_branch
      %75 = sbr.rel (0) target = $region37
    $region36: #{tpu_custom_call.1} parent=1 // pred_region
      %76 = dma.done [#allocation6], 1024
    $region37: #{tpu_custom_call.1} parent=1 // pred_fallthru
      _
    // Predicated region
    $region38: #{tpu_custom_call.1} parent=1 // pred_check
      _
    $region39: #{tpu_custom_call.1} parent=1 // pred_check_branch
      %78 = sbr.rel (0) target = $region41
    $region40: #{tpu_custom_call.1} parent=1 // pred_region
      %79 = dma.done [#allocation6], 1024
    $region41: #{tpu_custom_call.1} parent=1 // pred_fallthru
      _
    // Predicated region
    $region42: #{tpu_custom_call.1} parent=1 // pred_check
      _
    $region43: #{tpu_custom_call.1} parent=1 // pred_check_branch
      %81 = sbr.rel (0) target = $region45
    $region44: #{tpu_custom_call.1} parent=1 // pred_region
      %82 = dma.done [#allocation9], 1024
    $region45: #{tpu_custom_call.1} parent=1 // pred_fallthru
      _
    %v84 = vld [vmem:[#allocation2] sm:$0xf]
    %v85 = vld [vmem:[#allocation5] sm:$0xf]
    %v86 = vld [vmem:[#allocation5 + $0x4] sm:$0xf]
    %v87 = vld [vmem:[#allocation5 + $0x8] sm:$0xf]
    %v88 = vld [vmem:[#allocation5 + $0xc] sm:$0xf]
    %v89 = vld [vmem:[#allocation5 + $0x10] sm:$0xf]
    %v90 = vld [vmem:[#allocation5 + $0x14] sm:$0xf]
    %v91 = vld [vmem:[#allocation5 + $0x18] sm:$0xf]
    %v92 = vld [vmem:[#allocation5 + $0x1c] sm:$0xf]
    %v93 = vld [vmem:[#allocation5 + $0x20] sm:$0xf]
    %v94 = vld [vmem:[#allocation5 + $0x24] sm:$0xf]
    %v95 = vld [vmem:[#allocation5 + $0x28] sm:$0xf]
    %v96 = vld [vmem:[#allocation5 + $0x2c] sm:$0xf]
    %v97 = vld [vmem:[#allocation5 + $0x30] sm:$0xf]
    %v98 = vld [vmem:[#allocation5 + $0x34] sm:$0xf]
    %v99 = vld [vmem:[#allocation5 + $0x38] sm:$0xf]
    %v100 = vld [vmem:[#allocation5 + $0x3c] sm:$0xf]
    %v101 = vld [vmem:[%s2] sm:$0x1]
    %v103 = vlaneseq
    %v104 = vshrl.u32 %v103, 7
    %v105 = vsub.s32 0, %v104
    %v106 = vrot.slane %v101, %v105
    %v124 = vunpack.c.l.b16 %v85
    %v125 = vunpack.c.l.b16 %v86
    %v126 = vunpack.c.l.b16 %v87
    %v127 = vunpack.c.l.b16 %v88
    %v128 = vunpack.c.l.b16 %v89
    %v129 = vunpack.c.l.b16 %v90
    %v130 = vunpack.c.l.b16 %v91
    %v131 = vunpack.c.l.b16 %v92
    %v132 = vunpack.c.l.b16 %v93
    %v133 = vunpack.c.l.b16 %v94
    %v134 = vunpack.c.l.b16 %v95
    %v135 = vunpack.c.l.b16 %v96
    %v136 = vunpack.c.l.b16 %v97
    %v137 = vunpack.c.l.b16 %v98
    %v138 = vunpack.c.l.b16 %v99
    %v139 = vunpack.c.l.b16 %v100
    %v140 = vpack.c.b16 %v125, %v124
    %v141 = vpack.c.b16 %v127, %v126
    %v142 = vpack.c.b16 %v129, %v128
    %v143 = vpack.c.b16 %v131, %v130
    %v144 = vpack.c.b16 %v133, %v132
    %v145 = vpack.c.b16 %v135, %v134
    %v146 = vpack.c.b16 %v137, %v136
    %v147 = vpack.c.b16 %v139, %v138
    %156 = vmatprep.subr.bf16.mxu0 0
    %157 = vmatpush1.bf16.msra.mxu0 %v140
    %158 = vmatprep.subr.bf16.mxu0 0
    %159 = vmatpush1.bf16.msra.mxu0 %v141
    %160 = vmatprep.subr.bf16.mxu0 0
    %161 = vmatpush1.bf16.msra.mxu0 %v142
    %162 = vmatprep.subr.bf16.mxu0 0
    %163 = vmatpush1.bf16.msra.mxu0 %v143
    %164 = vmatprep.subr.bf16.mxu0 0
    %165 = vmatpush1.bf16.msra.mxu0 %v144
    %166 = vmatprep.subr.bf16.mxu0 0
    %167 = vmatpush1.bf16.msra.mxu0 %v145
    %168 = vmatprep.subr.bf16.mxu0 0
    %169 = vmatpush1.bf16.msra.mxu0 %v146
    %170 = vmatprep.subr.bf16.mxu0 0
    %171 = vmatpush1.bf16.msra.mxu0 %v147
    %172 = vmatprep.subr.bf16.mxu0 0
    %173 = vmatpush1.bf16.msra.mxu0 0
    %174 = vmatprep.subr.bf16.mxu0 0
    %175 = vmatpush1.bf16.msra.mxu0 0
    %176 = vmatprep.subr.bf16.mxu0 0
    %177 = vmatpush1.bf16.msra.mxu0 0
    %178 = vmatprep.subr.bf16.mxu0 0
    %179 = vmatpush1.bf16.msra.mxu0 0
    %180 = vmatprep.subr.bf16.mxu0 0
    %181 = vmatpush1.bf16.msra.mxu0 0
    %182 = vmatprep.subr.bf16.mxu0 0
    %183 = vmatpush1.bf16.msra.mxu0 0
    %184 = vmatprep.subr.bf16.mxu0 0
    %185 = vmatpush1.bf16.msra.mxu0 0
    %186 = vmatprep.subr.bf16.mxu0 0
    %187 = vmatpush1.bf16.msra.mxu0 0
    %188 = vmatprep.mubr.bf16.mxu0 0
    %189 = vmatmul.mubr.bf16.gmra.mrb[0].mxu0 %v84
    %v190 = vpop.f32.mrb[0].mxu0
    %v191 = vadd.f32 %v106, %v190
    %v192 = vpop.f32.mrb[0].mxu0
    %v193 = vpop.f32.mrb[0].mxu0
    %v194 = vpop.f32.mrb[0].mxu0
    %195 = vdwg.mxu0
    %v196 = vmax.f32 %v191, 0.0
    %v197 = vpack.c.bf16 %v196, %v196
    %v198 = vld [vmem:[#allocation7] sm:$0xf]
    %v199 = vld [vmem:[#allocation7 + $0x4] sm:$0xf]
    %v200 = vld [vmem:[#allocation7 + $0x8] sm:$0xf]
    %v201 = vld [vmem:[#allocation7 + $0xc] sm:$0xf]
    %v202 = vld [vmem:[#allocation7 + $0x10] sm:$0xf]
    %v203 = vld [vmem:[#allocation7 + $0x14] sm:$0xf]
    %v204 = vld [vmem:[#allocation7 + $0x18] sm:$0xf]
    %v205 = vld [vmem:[#allocation7 + $0x1c] sm:$0xf]
    %v206 = vld [vmem:[#allocation7 + $0x20] sm:$0xf]
    %v207 = vld [vmem:[#allocation7 + $0x24] sm:$0xf]
    %v208 = vld [vmem:[#allocation7 + $0x28] sm:$0xf]
    %v209 = vld [vmem:[#allocation7 + $0x2c] sm:$0xf]
    %v210 = vld [vmem:[#allocation7 + $0x30] sm:$0xf]
    %v211 = vld [vmem:[#allocation7 + $0x34] sm:$0xf]
    %v212 = vld [vmem:[#allocation7 + $0x38] sm:$0xf]
    %v213 = vld [vmem:[#allocation7 + $0x3c] sm:$0xf]
    %v214 = vld [vmem:[%s4] sm:$0x1]
    %v216 = vlaneseq
    %v217 = vshrl.u32 %v216, 7
    %v218 = vsub.s32 0, %v217
    %v219 = vrot.slane %v214, %v218
    %v237 = vunpack.c.l.b16 %v198
    %v238 = vunpack.c.l.b16 %v199
    %v239 = vunpack.c.l.b16 %v200
    %v240 = vunpack.c.l.b16 %v201
    %v241 = vunpack.c.l.b16 %v202
    %v242 = vunpack.c.l.b16 %v203
    %v243 = vunpack.c.l.b16 %v204
    %v244 = vunpack.c.l.b16 %v205
    %v245 = vunpack.c.l.b16 %v206
    %v246 = vunpack.c.l.b16 %v207
    %v247 = vunpack.c.l.b16 %v208
    %v248 = vunpack.c.l.b16 %v209
    %v249 = vunpack.c.l.b16 %v210
    %v250 = vunpack.c.l.b16 %v211
    %v251 = vunpack.c.l.b16 %v212
    %v252 = vunpack.c.l.b16 %v213
    %v253 = vpack.c.b16 %v238, %v237
    %v254 = vpack.c.b16 %v240, %v239
    %v255 = vpack.c.b16 %v242, %v241
    %v256 = vpack.c.b16 %v244, %v243
    %v257 = vpack.c.b16 %v246, %v245
    %v258 = vpack.c.b16 %v248, %v247
    %v259 = vpack.c.b16 %v250, %v249
    %v260 = vpack.c.b16 %v252, %v251
    %269 = vmatprep.subr.bf16.mxu0 0
    %270 = vmatpush1.bf16.msra.mxu0 %v253
    %271 = vmatprep.subr.bf16.mxu0 0
    %272 = vmatpush1.bf16.msra.mxu0 %v254
    %273 = vmatprep.subr.bf16.mxu0 0
    %274 = vmatpush1.bf16.msra.mxu0 %v255
    %275 = vmatprep.subr.bf16.mxu0 0
    %276 = vmatpush1.bf16.msra.mxu0 %v256
    %277 = vmatprep.subr.bf16.mxu0 0
    %278 = vmatpush1.bf16.msra.mxu0 %v257
    %279 = vmatprep.subr.bf16.mxu0 0
    %280 = vmatpush1.bf16.msra.mxu0 %v258
    %281 = vmatprep.subr.bf16.mxu0 0
    %282 = vmatpush1.bf16.msra.mxu0 %v259
    %283 = vmatprep.subr.bf16.mxu0 0
    %284 = vmatpush1.bf16.msra.mxu0 %v260
    %285 = vmatprep.subr.bf16.mxu0 0
    %286 = vmatpush1.bf16.msra.mxu0 0
    %287 = vmatprep.subr.bf16.mxu0 0
    %288 = vmatpush1.bf16.msra.mxu0 0
    %289 = vmatprep.subr.bf16.mxu0 0
    %290 = vmatpush1.bf16.msra.mxu0 0
    %291 = vmatprep.subr.bf16.mxu0 0
    %292 = vmatpush1.bf16.msra.mxu0 0
    %293 = vmatprep.subr.bf16.mxu0 0
    %294 = vmatpush1.bf16.msra.mxu0 0
    %295 = vmatprep.subr.bf16.mxu0 0
    %296 = vmatpush1.bf16.msra.mxu0 0
    %297 = vmatprep.subr.bf16.mxu0 0
    %298 = vmatpush1.bf16.msra.mxu0 0
    %299 = vmatprep.subr.bf16.mxu0 0
    %300 = vmatpush1.bf16.msra.mxu0 0
    %301 = vmatprep.mubr.bf16.mxu0 0
    %302 = vmatmul.mubr.bf16.gmra.mrb[0].mxu0 %v197
    %v303 = vpop.f32.mrb[0].mxu0
    %v304 = vadd.f32 %v219, %v303
    %v305 = vpop.f32.mrb[0].mxu0
    %v306 = vpop.f32.mrb[0].mxu0
    %v307 = vpop.f32.mrb[0].mxu0
    %308 = vdwg.mxu0
    %v309 = vld [vmem:[#allocation8] sm:$0xf]
    %v310 = vld [vmem:[#allocation8 + $0x4] sm:$0xf]
    %v311 = vld [vmem:[#allocation8 + $0x8] sm:$0xf]
    %v312 = vld [vmem:[#allocation8 + $0xc] sm:$0xf]
    %v313 = vld [vmem:[#allocation8 + $0x10] sm:$0xf]
    %v314 = vld [vmem:[#allocation8 + $0x14] sm:$0xf]
    %v315 = vld [vmem:[#allocation8 + $0x18] sm:$0xf]
    %v316 = vld [vmem:[#allocation8 + $0x1c] sm:$0xf]
    %v317 = vld [vmem:[#allocation8 + $0x20] sm:$0xf]
    %v318 = vld [vmem:[#allocation8 + $0x24] sm:$0xf]
    %v319 = vld [vmem:[#allocation8 + $0x28] sm:$0xf]
    %v320 = vld [vmem:[#allocation8 + $0x2c] sm:$0xf]
    %v321 = vld [vmem:[#allocation8 + $0x30] sm:$0xf]
    %v322 = vld [vmem:[#allocation8 + $0x34] sm:$0xf]
    %v323 = vld [vmem:[#allocation8 + $0x38] sm:$0xf]
    %v324 = vld [vmem:[#allocation8 + $0x3c] sm:$0xf]
    %v325 = vld [vmem:[%s6] sm:$0x1]
    %v327 = vlaneseq
    %v328 = vshrl.u32 %v327, 7
    %v329 = vsub.s32 0, %v328
    %v330 = vrot.slane %v325, %v329
    %v348 = vunpack.c.l.b16 %v309
    %v349 = vunpack.c.l.b16 %v310
    %v350 = vunpack.c.l.b16 %v311
    %v351 = vunpack.c.l.b16 %v312
    %v352 = vunpack.c.l.b16 %v313
    %v353 = vunpack.c.l.b16 %v314
    %v354 = vunpack.c.l.b16 %v315
    %v355 = vunpack.c.l.b16 %v316
    %v356 = vunpack.c.l.b16 %v317
    %v357 = vunpack.c.l.b16 %v318
    %v358 = vunpack.c.l.b16 %v319
    %v359 = vunpack.c.l.b16 %v320
    %v360 = vunpack.c.l.b16 %v321
    %v361 = vunpack.c.l.b16 %v322
    %v362 = vunpack.c.l.b16 %v323
    %v363 = vunpack.c.l.b16 %v324
    %v364 = vpack.c.b16 %v349, %v348
    %v365 = vpack.c.b16 %v351, %v350
    %v366 = vpack.c.b16 %v353, %v352
    %v367 = vpack.c.b16 %v355, %v354
    %v368 = vpack.c.b16 %v357, %v356
    %v369 = vpack.c.b16 %v359, %v358
    %v370 = vpack.c.b16 %v361, %v360
    %v371 = vpack.c.b16 %v363, %v362
    %380 = vmatprep.subr.bf16.mxu0 0
    %381 = vmatpush1.bf16.msra.mxu0 %v364
    %382 = vmatprep.subr.bf16.mxu0 0
    %383 = vmatpush1.bf16.msra.mxu0 %v365
    %384 = vmatprep.subr.bf16.mxu0 0
    %385 = vmatpush1.bf16.msra.mxu0 %v366
    %386 = vmatprep.subr.bf16.mxu0 0
    %387 = vmatpush1.bf16.msra.mxu0 %v367
    %388 = vmatprep.subr.bf16.mxu0 0
    %389 = vmatpush1.bf16.msra.mxu0 %v368
    %390 = vmatprep.subr.bf16.mxu0 0
    %391 = vmatpush1.bf16.msra.mxu0 %v369
    %392 = vmatprep.subr.bf16.mxu0 0
    %393 = vmatpush1.bf16.msra.mxu0 %v370
    %394 = vmatprep.subr.bf16.mxu0 0
    %395 = vmatpush1.bf16.msra.mxu0 %v371
    %396 = vmatprep.subr.bf16.mxu0 0
    %397 = vmatpush1.bf16.msra.mxu0 0
    %398 = vmatprep.subr.bf16.mxu0 0
    %399 = vmatpush1.bf16.msra.mxu0 0
    %400 = vmatprep.subr.bf16.mxu0 0
    %401 = vmatpush1.bf16.msra.mxu0 0
    %402 = vmatprep.subr.bf16.mxu0 0
    %403 = vmatpush1.bf16.msra.mxu0 0
    %404 = vmatprep.subr.bf16.mxu0 0
    %405 = vmatpush1.bf16.msra.mxu0 0
    %406 = vmatprep.subr.bf16.mxu0 0
    %407 = vmatpush1.bf16.msra.mxu0 0
    %408 = vmatprep.subr.bf16.mxu0 0
    %409 = vmatpush1.bf16.msra.mxu0 0
    %410 = vmatprep.subr.bf16.mxu0 0
    %411 = vmatpush1.bf16.msra.mxu0 0
    %412 = vmatprep.mubr.bf16.mxu0 0
    %413 = vmatmul.mubr.bf16.gmra.mrb[0].mxu0 %v197
    %v414 = vpop.f32.mrb[0].mxu0
    %v415 = vadd.f32 %v330, %v414
    %v416 = vpop.f32.mrb[0].mxu0
    %v417 = vpop.f32.mrb[0].mxu0
    %v418 = vpop.f32.mrb[0].mxu0
    %419 = vdwg.mxu0
    %v420 = vtanh.pop %v415
    %v421 = vadd.f32 %v420, 1.0
    %v422 = vmul.f32 %v421, 3.5
    %v423 = vadd.f32 %v422, -5.0
    %v424 = vmul.f32 %v423, 1.442695
    %v425 = vpow.pop %v424
    %426 = vst [vmem:[#allocation10] sm:$0xff] %v304
    %427 = vst [vmem:[#allocation11] sm:$0xff] %v425
    // Predicated region
    $region46: #{tpu_custom_call.1} parent=1 // pred_check
      _
    $region47: #{tpu_custom_call.1} parent=1 // pred_check_branch
      %429 = sbr.rel (0) target = $region49
    $region48: #{tpu_custom_call.1} parent=1 // pred_region
      %s431 = ssub.s32 128, 128
      %432 = vsyncadd [#allocation4], %s431
      %s434 = sshll.u32 [#allocation10], 4
      %s435 = int_to_ptr.vmem [resolvable:$true] %s434
      %437 = dma.vmem_to_hbm [thread:$0]  %s435, 128, %s7, [#allocation4]
    $region49: #{tpu_custom_call.1} parent=1 // pred_fallthru
      _
    // Predicated region
    $region50: #{tpu_custom_call.1} parent=1 // pred_check
      _
    $region51: #{tpu_custom_call.1} parent=1 // pred_check_branch
      %439 = sbr.rel (0) target = $region53
    $region52: #{tpu_custom_call.1} parent=1 // pred_region
      %s441 = ssub.s32 128, 128
      %442 = vsyncadd [#allocation12], %s441
      %s444 = sshll.u32 [#allocation11], 4
      %s445 = int_to_ptr.vmem [resolvable:$true] %s444
      %447 = dma.vmem_to_hbm [thread:$0]  %s445, 128, %s8, [#allocation12]
    $region53: #{tpu_custom_call.1} parent=1 // pred_fallthru
      _
    // Predicated region
    $region54: #{tpu_custom_call.1} parent=1 // pred_check
      _
    $region55: #{tpu_custom_call.1} parent=1 // pred_check_branch
      %449 = sbr.rel (0) target = $region57
    $region56: #{tpu_custom_call.1} parent=1 // pred_region
      %450 = dma.done [#allocation4], 128
    $region57: #{tpu_custom_call.1} parent=1 // pred_fallthru
      _
    // Predicated region
    $region58: #{tpu_custom_call.1} parent=1 // pred_check
      _
    $region59: #{tpu_custom_call.1} parent=1 // pred_check_branch
      %452 = sbr.rel (0) target = $region61
    $region60: #{tpu_custom_call.1} parent=1 // pred_region
      %453 = dma.done [#allocation12], 128
    $region61: #{tpu_custom_call.1} parent=1 // pred_fallthru
      _
    %454 = vsyncpa [#allocation3], 1
    %455 = vsyncpa [#allocation6], 1
    %456 = vsyncpa [#allocation9], 1
    %457 = vsyncpa [#allocation4], 1
    %458 = vsyncpa [#allocation12], 1

</llo_original>
